<compile_context>
chip_gen: v7x
topology: tpu7x:2x2x1
jax: 0.10.0
libtpu: 0.0.40
codegen_flags: <defaults>
</compile_context>

<pallas_src>
import functools

import jax
import jax.numpy as jnp
from jax.experimental import pallas as pl
from jax.experimental.pallas import tpu as pltpu


_SUBLANE_PACK = {4: 8, 2: 16, 1: 32}          # itemsize -> min sublane multiple
_BLOCK_BYTES_BUDGET = 4 * 1024 * 1024         # ~4 MiB/input block: 2x double-buffered
                                              # copies fit v5e(16)/v6e(32)/v7x(32) scoped VMEM


def _pick_tile(total, per_row_bytes, pack):
    """Largest tile (multiple of `pack`) with tile*per_row_bytes <= budget; full extent if small."""
    tile = max(pack, (_BLOCK_BYTES_BUDGET // max(per_row_bytes, 1)) // pack * pack)
    if tile >= total:
        return total  # full array extent is always a legal block dim
    return tile


# ---------------------------------------------------------------------------
# NCHW path: rows = (b, c) pairs, lanes = flattened spatial; reduce over lanes.
# ---------------------------------------------------------------------------
def _avgmax_rows_kernel(x_ref, o_ref, *, inv_s):
    x = x_ref[...].astype(jnp.float32)                    # (TR, S)
    row_max = jnp.max(x, axis=-1, keepdims=True)          # VPU across vregs + one XLU reduce
    row_avg = jnp.sum(x, axis=-1, keepdims=True) * inv_s
    o_ref[...] = (0.5 * row_avg + 0.5 * row_max).astype(o_ref.dtype)


def _avgmax_pool_nchw(x2d, row_block=None):
    R, S = x2d.shape
    itemsize = x2d.dtype.itemsize
    pack = _SUBLANE_PACK.get(itemsize, 8)
    if row_block is None:
        # TODO(synk): for extreme H*W (>~1M elems) add a second "arbitrary" grid
        # axis over S with a running-max/sum scratch; not needed for typical CNN shapes.
        row_block = _pick_tile(R, S * itemsize, pack)

    kernel = functools.partial(_avgmax_rows_kernel, inv_s=1.0 / S)
    return pl.pallas_call(
        kernel,
        out_shape=jax.ShapeDtypeStruct((R, 1), x2d.dtype),
        grid_spec=pltpu.PrefetchScalarGridSpec(
            num_scalar_prefetch=0,
            grid=(pl.cdiv(R, row_block),),
            in_specs=[pl.BlockSpec((row_block, S), lambda i: (i, 0))],
            out_specs=pl.BlockSpec((row_block, 1), lambda i: (i, 0)),
        ),
        compiler_params=pltpu.CompilerParams(
            dimension_semantics=("parallel",),          # lets v7x shard rows across both TCs
            vmem_limit_bytes=32 * 1024 * 1024,
        ),
        cost_estimate=pl.CostEstimate(
            flops=2 * R * S,
            transcendentals=0,
            bytes_accessed=R * S * itemsize + R * itemsize,
        ),
    )(x2d)


# ---------------------------------------------------------------------------
# NHWC path: reduce over the sublane (spatial) axis, keep C lane-dense.
# Accumulators are resident across the (last, "arbitrary") spatial grid axis.
# ---------------------------------------------------------------------------
def _avgmax_cols_kernel(x_ref, o_ref, max_acc, sum_acc, *, hw, ts, inv_hw):
    s = pl.program_id(1)

    @pl.when(s == 0)
    def _():
        max_acc[...] = jnp.full_like(max_acc, -jnp.inf)
        sum_acc[...] = jnp.zeros_like(sum_acc)

    x = x_ref[0].astype(jnp.float32)                      # (TS, C)
    if hw % ts != 0:
        # Mask padded rows of the (possibly partial) last spatial tile.
        rows_left = hw - s * ts
        row_ids = jax.lax.broadcasted_iota(jnp.int32, x.shape, 0)
        valid = row_ids < rows_left
        x_for_max = jnp.where(valid, x, -jnp.inf)
        x_for_sum = jnp.where(valid, x, 0.0)
    else:
        x_for_max = x
        x_for_sum = x

    max_acc[...] = jnp.maximum(max_acc[...], jnp.max(x_for_max, axis=0, keepdims=True))
    sum_acc[...] = sum_acc[...] + jnp.sum(x_for_sum, axis=0, keepdims=True)

    @pl.when(s == pl.num_programs(1) - 1)
    def _():
        o_ref[0] = (0.5 * (sum_acc[...] * inv_hw) + 0.5 * max_acc[...]).astype(o_ref.dtype)


def _avgmax_pool_nhwc(x3d, spatial_block=None):
    B, HW, C = x3d.shape
    itemsize = x3d.dtype.itemsize
    pack = _SUBLANE_PACK.get(itemsize, 8)
    if spatial_block is None:
        spatial_block = _pick_tile(HW, C * itemsize, pack)

    kernel = functools.partial(
        _avgmax_cols_kernel, hw=HW, ts=spatial_block, inv_hw=1.0 / HW)
    out = pl.pallas_call(
        kernel,
        out_shape=jax.ShapeDtypeStruct((B, 1, C), x3d.dtype),
        grid_spec=pltpu.PrefetchScalarGridSpec(
            num_scalar_prefetch=0,
            grid=(B, pl.cdiv(HW, spatial_block)),         # reduction axis last
            in_specs=[pl.BlockSpec((1, spatial_block, C), lambda b, s: (b, s, 0))],
            out_specs=pl.BlockSpec((1, 1, C), lambda b, s: (b, 0, 0)),
            scratch_shapes=[
                pltpu.VMEM((1, C), jnp.float32),          # running max
                pltpu.VMEM((1, C), jnp.float32),          # running sum
            ],
        ),
        compiler_params=pltpu.CompilerParams(
            dimension_semantics=("parallel", "arbitrary"),
            vmem_limit_bytes=32 * 1024 * 1024,
        ),
        cost_estimate=pl.CostEstimate(
            flops=2 * B * HW * C,
            transcendentals=0,
            bytes_accessed=B * HW * C * itemsize + B * C * itemsize,
        ),
    )(x3d)
    return out.reshape(B, C)


# ---------------------------------------------------------------------------
# Public wrapper matching FastAdaptiveAvgMaxPool.forward
# ---------------------------------------------------------------------------
def fast_adaptive_avg_max_pool(x, flatten: bool = False, input_fmt: str = "NCHW",
                               *, row_block=None, spatial_block=None):
    """Pallas equivalent of FastAdaptiveAvgMaxPool.forward: 0.5*mean + 0.5*amax over spatial dims."""
    if input_fmt == "NCHW":
        B, C, H, W = x.shape
        pooled = _avgmax_pool_nchw(x.reshape(B * C, H * W), row_block=row_block).reshape(B, C)
        return pooled if flatten else pooled.reshape(B, C, 1, 1)
    elif input_fmt == "NHWC":
        B, H, W, C = x.shape
        pooled = _avgmax_pool_nhwc(x.reshape(B, H * W, C), spatial_block=spatial_block)
        return pooled if flatten else pooled.reshape(B, 1, 1, C)
    else:
        raise ValueError(f"unsupported input_fmt {input_fmt!r}")


if __name__ == "__main__":
    key = jax.random.PRNGKey(0)
    k1, k2 = jax.random.split(key)

    def ref_pool(x, dims, flatten):
        avg = jnp.mean(x, axis=dims, keepdims=not flatten)
        mx = jnp.max(x, axis=dims, keepdims=not flatten)
        return 0.5 * avg + 0.5 * mx

    # 1) NCHW, keepdim
    x = jax.random.normal(key, (2, 4, 16, 16), dtype=jnp.float32)
    out = jax.block_until_ready(fast_adaptive_avg_max_pool(x, flatten=False, input_fmt="NCHW"))
    assert out.shape == (2, 4, 1, 1), out.shape
    assert jnp.allclose(out, ref_pool(x, (2, 3), False), atol=1e-5, rtol=1e-5), "NCHW keepdim mismatch"

    # 2) NCHW, flatten
    out = jax.block_until_ready(fast_adaptive_avg_max_pool(x, flatten=True, input_fmt="NCHW"))
    assert out.shape == (2, 4), out.shape
    assert jnp.allclose(out, ref_pool(x, (2, 3), True), atol=1e-5, rtol=1e-5), "NCHW flatten mismatch"

    # 3) NCHW: odd H*W (lane padding), all-negative values, partial row blocks (R=20, TR=8)
    xneg = -(jnp.abs(jax.random.normal(k1, (4, 5, 7, 7), dtype=jnp.float32)) + 0.5)
    out = jax.block_until_ready(
        fast_adaptive_avg_max_pool(xneg, flatten=True, input_fmt="NCHW", row_block=8))
    assert out.shape == (4, 5), out.shape
    assert jnp.allclose(out, ref_pool(xneg, (2, 3), True), atol=1e-5, rtol=1e-5), "NCHW odd/neg mismatch"

    # 4) NHWC, keepdim: partial spatial tiles (HW=49, TS=16), all-negative values
    xh = -(jnp.abs(jax.random.normal(k2, (2, 7, 7, 4), dtype=jnp.float32)) + 0.5)
    out = jax.block_until_ready(
        fast_adaptive_avg_max_pool(xh, flatten=False, input_fmt="NHWC", spatial_block=16))
    assert out.shape == (2, 1, 1, 4), out.shape
    assert jnp.allclose(out, ref_pool(xh, (1, 2), False), atol=1e-5, rtol=1e-5), "NHWC keepdim mismatch"

    # 5) NHWC, flatten (single spatial tile)
    out = jax.block_until_ready(fast_adaptive_avg_max_pool(xh, flatten=True, input_fmt="NHWC"))
    assert out.shape == (2, 4), out.shape
    assert jnp.allclose(out, ref_pool(xh, (1, 2), True), atol=1e-5, rtol=1e-5), "NHWC flatten mismatch"

    print("KERNEL_OK")
</pallas_src>

<mosaic_0001>
module attributes {stable_mosaic.version = 11 : i64} {
  func.func @_avgmax_rows_kernel(%arg0: i32, %arg1: memref<8x256xf32, #tpu.memory_space<vmem>>, %arg2: memref<8x1xf32, #tpu.memory_space<vmem>>) attributes {dimension_semantics = [#tpu.dimension_semantics<parallel>], iteration_bounds = array<i64: 1>, scalar_prefetch = 0 : i64, scratch_operands = 0 : i64, tpu.core_type = #tpu.core_type<tc>, window_params = [{transform_indices = @transform_0, window_bounds = array<i64: 8, 256>}, {transform_indices = @transform_1, window_bounds = array<i64: 8, 1>}]} {
    %c0 = arith.constant 0 : index
    %c0_0 = arith.constant 0 : index
    %0 = vector.load %arg1[%c0, %c0_0] : memref<8x256xf32, #tpu.memory_space<vmem>>, vector<8x256xf32>
    %cst = arith.constant dense<0xFF800000> : vector<8xf32>
    %1 = vector.multi_reduction <maximumf>, %0, %cst [1] : vector<8x256xf32> to vector<8xf32>
    %2 = vector.shape_cast %1 : vector<8xf32> to vector<8x1xf32>
    %cst_1 = arith.constant dense<0.000000e+00> : vector<8xf32>
    %3 = vector.multi_reduction <add>, %0, %cst_1 [1] : vector<8x256xf32> to vector<8xf32>
    %4 = vector.shape_cast %3 : vector<8xf32> to vector<8x1xf32>
    %cst_2 = arith.constant 3.906250e-03 : f32
    %5 = vector.broadcast %cst_2 : f32 to vector<8x1xf32>
    %6 = arith.mulf %4, %5 : vector<8x1xf32>
    %cst_3 = arith.constant 5.000000e-01 : f32
    %7 = vector.broadcast %cst_3 : f32 to vector<8x1xf32>
    %8 = arith.mulf %7, %6 : vector<8x1xf32>
    %cst_4 = arith.constant 5.000000e-01 : f32
    %9 = vector.broadcast %cst_4 : f32 to vector<8x1xf32>
    %10 = arith.mulf %9, %2 : vector<8x1xf32>
    %11 = arith.addf %8, %10 : vector<8x1xf32>
    %c0_5 = arith.constant 0 : index
    %c0_6 = arith.constant 0 : index
    %12 = vector.load %arg2[%c0_5, %c0_6] : memref<8x1xf32, #tpu.memory_space<vmem>>, vector<8x1xf32>
    tpu.vector_store %arg2[%c0_5, %c0_6], %11 {strides = array<i32>} : memref<8x1xf32, #tpu.memory_space<vmem>>, vector<8x1xf32>,
    return
  }
  func.func @transform_0(%arg0: i32) -> (i32, i32) {
    %c0_i32 = arith.constant 0 : i32
    %c0_i32_0 = arith.constant 0 : i32
    return %arg0, %c0_i32 : i32, i32
  }
  func.func @transform_1(%arg0: i32) -> (i32, i32) {
    %c0_i32 = arith.constant 0 : i32
    %c0_i32_0 = arith.constant 0 : i32
    return %arg0, %c0_i32 : i32, i32
  }
}

</mosaic_0001>

<llo_original>
// kernel: tpu_custom_call.1
$region0: #{tpu_custom_call.1}
  #allocation0 [shape = 'u32[]', space=smem, size = 0x4, offset = 0x4, fixed_abs, tag = 'smem constant byte address 0x4 - core index']
  #allocation1 [shape = 'u32[144,128]{1,0:T(1,128)}', space=vmem, size = 0x12000, scoped, tag = 'internal scratch']
  %s0 = inlined_call_operand.hbm [shape: f32[8,256], index: 0, kind: input, shape index: {}]
  %s1 = inlined_call_operand.vmem [shape: f32[8,1], index: 1, kind: output, shape index: {}]
  %s2 = sld [smem:[#allocation0]]
  $region18: #{tpu_custom_call.1} parent=0
    _
  %s4 = ssub.s32 1, %s2
  %s5 = scalar_select 0, %s4, %s2
  $region1: #{tpu_custom_call.1} parent=0
    #allocation2 [shape = 'u8[8192]{0}', space=vmem, size = 0x2000, scoped, tag = 'input window, operand 0, single buffered']
    #allocation3 [shape = 's32[1]{0}', space=sflag, size = 0x4, scoped, tag = 'scoped memory for tpu_custom_call.1']
    %6 = vsyncpa [#allocation3], 0
    // Predicated region
    $region2: #{tpu_custom_call.1} parent=1 // pred_check
      _
    $region3: #{tpu_custom_call.1} parent=1 // pred_check_branch
      %8 = sbr.rel (0) target = $region5
    $region4: #{tpu_custom_call.1} parent=1 // pred_region
      %s10 = ssub.s32 256, 256
      %11 = vsyncadd [#allocation3], %s10
      %s13 = sshll.u32 [#allocation2], 4
      %s14 = int_to_ptr.vmem [resolvable:$true] %s13
      %16 = dma.hbm_to_vmem [thread:$0]  %s0, 256, %s14, [#allocation3]
    $region5: #{tpu_custom_call.1} parent=1 // pred_fallthru
      _
    // Predicated region
    $region6: #{tpu_custom_call.1} parent=1 // pred_check
      _
    $region7: #{tpu_custom_call.1} parent=1 // pred_check_branch
      %18 = sbr.rel (0) target = $region9
    $region8: #{tpu_custom_call.1} parent=1 // pred_region
      %19 = dma.done [#allocation3], 256
    $region9: #{tpu_custom_call.1} parent=1 // pred_fallthru
      _
    %v20 = vld [vmem:[#allocation2] sm:$0xff]
    %v21 = vld [vmem:[#allocation2 + $0x8] sm:$0xff]
    %v22 = vmax.f32 %v20, %v21
    %23 = vmax.xlane.f32.xlu0 %v22
    %v24 = vpop.xlane.xlu0 %23
    %v25 = vadd.f32 %v20, %v21
    %26 = vadd.xlane.f32.xlu0 %v25
    %v27 = vpop.xlane.xlu0 %26
    %v28 = vmul.f32 %v27, 0.00390625
    %v29 = vmul.f32 %v28, 0.5
    %v30 = vmul.f32 %v24, 0.5
    %v31 = vadd.f32 %v29, %v30
    %vm32 = vcmask 7168
    %33 = vst.msk [vmem:[%s1] sm:$0xff] %vm32, %v31
    // Predicated region
    $region10: #{tpu_custom_call.1} parent=1 // pred_check
      _
    $region11: #{tpu_custom_call.1} parent=1 // pred_check_branch
      %35 = sbr.rel (0) target = $region13
    $region12: #{tpu_custom_call.1} parent=1 // pred_region
      _
    $region13: #{tpu_custom_call.1} parent=1 // pred_fallthru
      _
    // Predicated region
    $region14: #{tpu_custom_call.1} parent=1 // pred_check
      _
    $region15: #{tpu_custom_call.1} parent=1 // pred_check_branch
      %37 = sbr.rel (0) target = $region17
    $region16: #{tpu_custom_call.1} parent=1 // pred_region
      _
    $region17: #{tpu_custom_call.1} parent=1 // pred_fallthru
      _
    %38 = vsyncpa [#allocation3], 1

</llo_original>
